<compile_context>
chip_gen: v7x
topology: tpu7x:2x2x1
jax: 0.10.0
libtpu: 0.0.40
codegen_flags: <defaults>
</compile_context>

<pallas_src>
import jax
import jax.numpy as jnp
from jax.experimental import pallas as pl
from jax.experimental.pallas import tpu as pltpu


def _round_up(x, m):
    return (x + m - 1) // m * m


def _gcn_kernel(adj_ref, xw_ref, b_ref, o_ref, acc_ref):
    # adj_ref: (tm, tk) f32   xw_ref: (tk, Hp) bf16   b_ref: (1, Hp) f32
    # o_ref:   (tm, Hp) f32   acc_ref: (tm, Hp) f32 scratch (resident over k)
    k = pl.program_id(1)

    @pl.when(k == 0)
    def _():
        acc_ref[...] = jnp.zeros_like(acc_ref)

    # Cast the f32 adjacency tile to bf16 in-kernel (VPU, cheap) so HBM only
    # ever streams the original f32 once; accumulate in f32 on the MXU.
    acc_ref[...] += jnp.dot(adj_ref[...].astype(jnp.bfloat16), xw_ref[...],
                            preferred_element_type=jnp.float32)

    @pl.when(k == pl.num_programs(1) - 1)
    def _():
        o_ref[...] = jnp.maximum(acc_ref[...] + b_ref[...], 0.0).astype(o_ref.dtype)


def model_wrapper_forward(graph, features, weight, bias,
                          feat=None, eweight=None, *, tm=None, tk=None):
    """Pallas equivalent of ModelWrapper.forward: ignores feat/eweight and runs
    the wrapped model (one GCN layer stand-in) on (graph, features)."""
    del feat, eweight  # ModelWrapper drops these — same semantics here.
    N = graph.shape[0]
    F = features.shape[1]
    H = weight.shape[1]

    # --- tile selection -------------------------------------------------------
    Hp = _round_up(H, 128)                       # lane-dense hidden dim
    if N <= 256:
        tm = _round_up(N, 8) if tm is None else tm
        Np = _round_up(N, tm)
        tk = Np if tk is None else tk            # single K step (full extent)
    else:
        tm = 256 if tm is None else tm
        Np = _round_up(N, max(tm, 256))
        if tk is None:
            # Largest lane-aligned K tile that divides Np (bounded VMEM).
            tk = next(t for t in (2048, 1024, 512, 256) if Np % t == 0)

    # --- padding (only when actually needed) ----------------------------------
    adj = graph if Np == N else jnp.pad(graph, ((0, Np - N), (0, Np - N)))
    x = features if Np == N else jnp.pad(features, ((0, Np - N), (0, 0)))
    w = weight if Hp == H else jnp.pad(weight, ((0, 0), (0, Hp - H)))
    b = jnp.reshape(bias, (1, H))
    b = b if Hp == H else jnp.pad(b, ((0, 0), (0, Hp - H)))

    # Tiny, lane-sparse (F small) contraction: plain JAX, no extra Pallas launch.
    xw = jnp.dot(x, w).astype(jnp.bfloat16)      # (Np, Hp) bf16

    grid = (Np // tm, Np // tk)

    # VMEM working set: every pipelined input/output is double-buffered.
    est_vmem = (2 * tm * tk * 4          # adj tiles (f32)
                + 2 * tk * Hp * 2        # xw tiles (bf16)
                + 2 * Hp * 4             # bias
                + 2 * tm * Hp * 4        # output tiles
                + tm * Hp * 4            # accumulator scratch
                + (1 << 20))             # headroom
    vmem_limit = None
    if est_vmem > (12 << 20):            # above the tightest scoped default (v5e)
        try:
            cap = pltpu.get_tpu_info().vmem_capacity_bytes - (8 << 20)
        except Exception:
            cap = 56 << 20               # safe on every generation (v7x = 64 MiB)
        vmem_limit = int(min(est_vmem, cap))

    out = pl.pallas_call(
        _gcn_kernel,
        out_shape=jax.ShapeDtypeStruct((Np, Hp), jnp.float32),
        grid_spec=pltpu.PrefetchScalarGridSpec(
            num_scalar_prefetch=0,
            grid=grid,
            in_specs=[
                pl.BlockSpec((tm, tk), lambda i, k: (i, k)),   # adjacency tile (f32)
                pl.BlockSpec((tk, Hp), lambda i, k: (k, 0)),   # XW tile (bf16)
                pl.BlockSpec((1, Hp), lambda i, k: (0, 0)),    # bias (f32)
            ],
            out_specs=pl.BlockSpec((tm, Hp), lambda i, k: (i, 0)),
            scratch_shapes=[pltpu.VMEM((tm, Hp), jnp.float32)],
        ),
        compiler_params=pltpu.CompilerParams(
            dimension_semantics=("parallel", "arbitrary"),
            vmem_limit_bytes=vmem_limit),
        cost_estimate=pl.CostEstimate(
            flops=2 * Np * Np * Hp + 2 * Np * Hp,
            transcendentals=0,
            bytes_accessed=Np * Np * 4 + Np * Hp * 2 + Hp * 4 + Np * Hp * 4),
    )(adj, xw, b)

    return out[:N, :H]


def _reference(graph, features, weight, bias):
    return jnp.maximum(graph @ features @ weight + bias, 0.0)


if __name__ == "__main__":
    # Small, deterministic problem: N=128 nodes, F=32 features, H=32 hidden.
    N, F, H = 128, 32, 32
    key = jax.random.PRNGKey(0)
    k_adj, k_feat, k_w, k_b = jax.random.split(key, 4)

    # Deterministic random undirected graph with self-loops, symmetric-normalized:
    # A_hat = D^{-1/2} (A + I) D^{-1/2}.
    logits = jax.random.uniform(k_adj, (N, N))
    a = (logits + logits.T > 1.4).astype(jnp.float32)
    a = a + jnp.eye(N, dtype=jnp.float32)
    deg = jnp.sum(a, axis=1)
    d_inv_sqrt = 1.0 / jnp.sqrt(deg)
    graph = a * d_inv_sqrt[:, None] * d_inv_sqrt[None, :]              # [N, N]

    features = jax.random.normal(k_feat, (N, F), dtype=jnp.float32)    # [N, F]
    weight = jax.random.normal(k_w, (F, H), dtype=jnp.float32) * (1.0 / jnp.sqrt(F))
    bias = jax.random.normal(k_b, (1, H), dtype=jnp.float32) * 0.01

    out = model_wrapper_forward(graph, features, weight, bias,
                                feat=None, eweight=None)
    out = jax.block_until_ready(out)

    ref = _reference(graph, features, weight, bias)
    assert out.shape == (N, H)
    # bf16 adjacency / XW MXU streams with f32 accumulation -> loosened tolerance.
    assert jnp.allclose(out, ref, atol=2e-2, rtol=2e-2)

    # TODO(synk): ModelWrapper wraps an arbitrary externally supplied `model`;
    # a single GCN layer is the deterministic synthetic stand-in since the
    # source provides no concrete architecture.
    print("KERNEL_OK")
</pallas_src>

<mosaic_0001>
module attributes {stable_mosaic.version = 11 : i64} {
  func.func @_gcn_kernel(%arg0: i32, %arg1: i32, %arg2: memref<128x128xf32, #tpu.memory_space<vmem>>, %arg3: memref<128x128xbf16, #tpu.memory_space<vmem>>, %arg4: memref<1x128xf32, #tpu.memory_space<vmem>>, %arg5: memref<128x128xf32, #tpu.memory_space<vmem>>, %arg6: memref<128x128xf32, #tpu.memory_space<vmem>>) attributes {dimension_semantics = [#tpu.dimension_semantics<parallel>, #tpu.dimension_semantics<arbitrary>], iteration_bounds = array<i64: 1, 1>, scalar_prefetch = 0 : i64, scratch_operands = 1 : i64, tpu.core_type = #tpu.core_type<tc>, window_params = [{transform_indices = @transform_0, window_bounds = array<i64: 128, 128>}, {transform_indices = @transform_1, window_bounds = array<i64: 128, 128>}, {pipeline_mode = #tpu.pipeline_mode<synchronous>, transform_indices = @transform_2, window_bounds = array<i64: 1, 128>}, {transform_indices = @transform_3, window_bounds = array<i64: 128, 128>}]} {
    %c0_i32 = arith.constant 0 : i32
    %0 = arith.cmpi eq, %arg1, %c0_i32 : i32
    %1 = arith.extui %0 : i1 to i32
    %c0_i32_0 = arith.constant 0 : i32
    %2 = arith.cmpi ne, %1, %c0_i32_0 : i32
    scf.if %2 {
      %cst_10 = arith.constant 0.000000e+00 : f32
      %13 = vector.broadcast %cst_10 : f32 to vector<128x128xf32>
      %c0_11 = arith.constant 0 : index
      %c0_12 = arith.constant 0 : index
      %14 = vector.load %arg6[%c0_11, %c0_12] : memref<128x128xf32, #tpu.memory_space<vmem>>, vector<128x128xf32>
      tpu.vector_store %arg6[%c0_11, %c0_12], %13 {strides = array<i32>} : memref<128x128xf32, #tpu.memory_space<vmem>>, vector<128x128xf32>,
    } else {
    }
    %c0 = arith.constant 0 : index
    %c0_1 = arith.constant 0 : index
    %3 = vector.load %arg6[%c0, %c0_1] : memref<128x128xf32, #tpu.memory_space<vmem>>, vector<128x128xf32>
    %c0_2 = arith.constant 0 : index
    %c0_3 = arith.constant 0 : index
    %4 = vector.load %arg2[%c0_2, %c0_3] : memref<128x128xf32, #tpu.memory_space<vmem>>, vector<128x128xf32>
    %5 = arith.truncf %4 : vector<128x128xf32> to vector<128x128xbf16>
    %c0_4 = arith.constant 0 : index
    %c0_5 = arith.constant 0 : index
    %6 = vector.load %arg3[%c0_4, %c0_5] : memref<128x128xbf16, #tpu.memory_space<vmem>>, vector<128x128xbf16>
    %cst = arith.constant dense<0.000000e+00> : vector<128x128xf32>
    %7 = tpu.matmul %5, %6, %cst {dimension_numbers = #tpu.dot_dimension_numbers<[1], [0], [0], [1], [0, 0, 1, 1], [], []>} : vector<128x128xbf16>, vector<128x128xbf16>, vector<128x128xf32> -> vector<128x128xf32>
    %8 = arith.addf %3, %7 : vector<128x128xf32>
    %c0_6 = arith.constant 0 : index
    %c0_7 = arith.constant 0 : index
    %9 = vector.load %arg6[%c0_6, %c0_7] : memref<128x128xf32, #tpu.memory_space<vmem>>, vector<128x128xf32>
    tpu.vector_store %arg6[%c0_6, %c0_7], %8 {strides = array<i32>} : memref<128x128xf32, #tpu.memory_space<vmem>>, vector<128x128xf32>,
    %c0_i32_8 = arith.constant 0 : i32
    %10 = arith.cmpi eq, %arg1, %c0_i32_8 : i32
    %11 = arith.extui %10 : i1 to i32
    %c0_i32_9 = arith.constant 0 : i32
    %12 = arith.cmpi ne, %11, %c0_i32_9 : i32
    scf.if %12 {
      %c0_10 = arith.constant 0 : index
      %c0_11 = arith.constant 0 : index
      %13 = vector.load %arg6[%c0_10, %c0_11] : memref<128x128xf32, #tpu.memory_space<vmem>>, vector<128x128xf32>
      %c0_12 = arith.constant 0 : index
      %c0_13 = arith.constant 0 : index
      %14 = vector.load %arg4[%c0_12, %c0_13] : memref<1x128xf32, #tpu.memory_space<vmem>>, vector<1x128xf32>
      %15 = vector.broadcast %14 : vector<1x128xf32> to vector<128x128xf32>
      %16 = arith.addf %13, %15 : vector<128x128xf32>
      %cst_14 = arith.constant 0.000000e+00 : f32
      %17 = vector.broadcast %cst_14 : f32 to vector<128x128xf32>
      %18 = arith.maximumf %16, %17 : vector<128x128xf32>
      %c0_15 = arith.constant 0 : index
      %c0_16 = arith.constant 0 : index
      %19 = vector.load %arg5[%c0_15, %c0_16] : memref<128x128xf32, #tpu.memory_space<vmem>>, vector<128x128xf32>
      tpu.vector_store %arg5[%c0_15, %c0_16], %18 {strides = array<i32>} : memref<128x128xf32, #tpu.memory_space<vmem>>, vector<128x128xf32>,
    } else {
    }
    return
  }
  func.func @transform_0(%arg0: i32, %arg1: i32) -> (i32, i32) {
    %c0_i32 = arith.constant 0 : i32
    return %arg0, %arg1 : i32, i32
  }
  func.func @transform_1(%arg0: i32, %arg1: i32) -> (i32, i32) {
    %c0_i32 = arith.constant 0 : i32
    %c0_i32_0 = arith.constant 0 : i32
    return %arg1, %c0_i32 : i32, i32
  }
  func.func @transform_2(%arg0: i32, %arg1: i32) -> (i32, i32) {
    %c0_i32 = arith.constant 0 : i32
    %c0_i32_0 = arith.constant 0 : i32
    %c0_i32_1 = arith.constant 0 : i32
    return %c0_i32, %c0_i32_0 : i32, i32
  }
  func.func @transform_3(%arg0: i32, %arg1: i32) -> (i32, i32) {
    %c0_i32 = arith.constant 0 : i32
    %c0_i32_0 = arith.constant 0 : i32
    return %arg0, %c0_i32 : i32, i32
  }
}

</mosaic_0001>

<llo_original>
// kernel: tpu_custom_call.1
$region0: #{tpu_custom_call.1}
  #allocation0 [shape = 'u32[]', space=smem, size = 0x4, offset = 0x4, fixed_abs, tag = 'smem constant byte address 0x4 - core index']
  #allocation1 [shape = 'u32[144,128]{1,0:T(1,128)}', space=vmem, size = 0x12000, scoped, tag = 'internal scratch']
  #allocation2 [shape = 'f32[128,128]{1,0:T(8,128)}', space=vmem, size = 0x10000, scoped, tag = 'scratch operand']
  %s0 = inlined_call_operand.hbm [shape: f32[128,128], index: 0, kind: input, shape index: {}]
  %s1 = inlined_call_operand.hbm [shape: bf16[128,128], index: 1, kind: input, shape index: {}]
  %s2 = inlined_call_operand.vmem [shape: f32[1,128], index: 2, kind: input, shape index: {}]
  %s3 = inlined_call_operand.hbm [shape: f32[128,128], index: 3, kind: output, shape index: {}]
  %s4 = sld [smem:[#allocation0]]
  $region38: #{tpu_custom_call.1} parent=0
    _
  %s6 = ssub.s32 1, %s4
  %s7 = scalar_select 0, %s6, %s4
  $region1: #{tpu_custom_call.1} parent=0
    #allocation3 [shape = 'u8[65536]{0}', space=vmem, size = 0x10000, scoped, tag = 'input window, operand 0, single buffered']
    #allocation4 [shape = 's32[1]{0}', space=sflag, size = 0x4, scoped, tag = 'scoped memory for tpu_custom_call.1']
    #allocation5 [shape = 's32[1]{0}', space=sflag, size = 0x4, scoped, tag = 'scoped memory for tpu_custom_call.1']
    #allocation6 [shape = 'u8[32768]{0}', space=vmem, size = 0x8000, scoped, tag = 'input window, operand 1, single buffered']
    #allocation7 [shape = 's32[1]{0}', space=sflag, size = 0x4, scoped, tag = 'scoped memory for tpu_custom_call.1']
    #allocation8 [shape = 'u8[65536]{0}', space=vmem, size = 0x10000, scoped, tag = 'output window, operand 0, single buffered']
    %8 = vsyncpa [#allocation4], 0
    %9 = vsyncpa [#allocation7], 0
    %10 = vsyncpa [#allocation5], 0
    // Predicated region
    $region2: #{tpu_custom_call.1} parent=1 // pred_check
      _
    $region3: #{tpu_custom_call.1} parent=1 // pred_check_branch
      %12 = sbr.rel (0) target = $region5
    $region4: #{tpu_custom_call.1} parent=1 // pred_region
      %s14 = ssub.s32 2048, 2048
      %15 = vsyncadd [#allocation4], %s14
      %s16 = sshll.u32 [#allocation3], 4
      %s17 = int_to_ptr.vmem [resolvable:$true] %s16
      %22 = dma.hbm_to_vmem [thread:$0]  %s0, 2048, %s17, [#allocation4], 128, 128, 8
    $region5: #{tpu_custom_call.1} parent=1 // pred_fallthru
      _
    // Predicated region
    $region6: #{tpu_custom_call.1} parent=1 // pred_check
      _
    $region7: #{tpu_custom_call.1} parent=1 // pred_check_branch
      %24 = sbr.rel (0) target = $region9
    $region8: #{tpu_custom_call.1} parent=1 // pred_region
      %s26 = ssub.s32 1024, 1024
      %27 = vsyncadd [#allocation7], %s26
      %s28 = sshll.u32 [#allocation6], 4
      %s29 = int_to_ptr.vmem [resolvable:$true] %s28
      %34 = dma.hbm_to_vmem [thread:$0]  %s1, 1024, %s29, [#allocation7], 64, 64, 4
    $region9: #{tpu_custom_call.1} parent=1 // pred_fallthru
      _
    // Predicated region
    $region10: #{tpu_custom_call.1} parent=1 // pred_check
      _
    $region11: #{tpu_custom_call.1} parent=1 // pred_check_branch
      %36 = sbr.rel (0) target = $region13
    $region12: #{tpu_custom_call.1} parent=1 // pred_region
      _
    $region13: #{tpu_custom_call.1} parent=1 // pred_fallthru
      _
    // Predicated region
    $region14: #{tpu_custom_call.1} parent=1 // pred_check
      _
    $region15: #{tpu_custom_call.1} parent=1 // pred_check_branch
      %38 = sbr.rel (0) target = $region17
    $region16: #{tpu_custom_call.1} parent=1 // pred_region
      %39 = dma.done [#allocation4], 2048
    $region17: #{tpu_custom_call.1} parent=1 // pred_fallthru
      _
    // Predicated region
    $region18: #{tpu_custom_call.1} parent=1 // pred_check
      _
    $region19: #{tpu_custom_call.1} parent=1 // pred_check_branch
      %41 = sbr.rel (0) target = $region21
    $region20: #{tpu_custom_call.1} parent=1 // pred_region
      %42 = dma.done [#allocation7], 1024
    $region21: #{tpu_custom_call.1} parent=1 // pred_fallthru
      _
    %p44 = scmp.eq.s32.totalorder 0, 0
    // Predicated region
    $region22: #{tpu_custom_call.1} parent=1 // pred_check
      %p45 = pneg %p44
    $region23: #{tpu_custom_call.1} parent=1 // pred_check_branch
      %47 = sbr.rel (%p45) target = $region25
    $region24: #{tpu_custom_call.1} parent=1 // pred_region
      %48 = vst [vmem:[#allocation2] sm:$0xff] 0.0
      %49 = vst [vmem:[#allocation2 + $0x8] sm:$0xff] 0.0
      %50 = vst [vmem:[#allocation2 + $0x10] sm:$0xff] 0.0
      %51 = vst [vmem:[#allocation2 + $0x18] sm:$0xff] 0.0
      %52 = vst [vmem:[#allocation2 + $0x20] sm:$0xff] 0.0
      %53 = vst [vmem:[#allocation2 + $0x28] sm:$0xff] 0.0
      %54 = vst [vmem:[#allocation2 + $0x30] sm:$0xff] 0.0
      %55 = vst [vmem:[#allocation2 + $0x38] sm:$0xff] 0.0
      %56 = vst [vmem:[#allocation2 + $0x40] sm:$0xff] 0.0
      %57 = vst [vmem:[#allocation2 + $0x48] sm:$0xff] 0.0
      %58 = vst [vmem:[#allocation2 + $0x50] sm:$0xff] 0.0
      %59 = vst [vmem:[#allocation2 + $0x58] sm:$0xff] 0.0
      %60 = vst [vmem:[#allocation2 + $0x60] sm:$0xff] 0.0
      %61 = vst [vmem:[#allocation2 + $0x68] sm:$0xff] 0.0
      %62 = vst [vmem:[#allocation2 + $0x70] sm:$0xff] 0.0
      %63 = vst [vmem:[#allocation2 + $0x78] sm:$0xff] 0.0
    $region25: #{tpu_custom_call.1} parent=1 // pred_fallthru
      _
    %v64 = vld [vmem:[#allocation2] sm:$0xff]
    %v65 = vld [vmem:[#allocation2 + $0x8] sm:$0xff]
    %v66 = vld [vmem:[#allocation2 + $0x10] sm:$0xff]
    %v67 = vld [vmem:[#allocation2 + $0x18] sm:$0xff]
    %v68 = vld [vmem:[#allocation2 + $0x20] sm:$0xff]
    %v69 = vld [vmem:[#allocation2 + $0x28] sm:$0xff]
    %v70 = vld [vmem:[#allocation2 + $0x30] sm:$0xff]
    %v71 = vld [vmem:[#allocation2 + $0x38] sm:$0xff]
    %v72 = vld [vmem:[#allocation2 + $0x40] sm:$0xff]
    %v73 = vld [vmem:[#allocation2 + $0x48] sm:$0xff]
    %v74 = vld [vmem:[#allocation2 + $0x50] sm:$0xff]
    %v75 = vld [vmem:[#allocation2 + $0x58] sm:$0xff]
    %v76 = vld [vmem:[#allocation2 + $0x60] sm:$0xff]
    %v77 = vld [vmem:[#allocation2 + $0x68] sm:$0xff]
    %v78 = vld [vmem:[#allocation2 + $0x70] sm:$0xff]
    %v79 = vld [vmem:[#allocation2 + $0x78] sm:$0xff]
    %v80 = vld [vmem:[#allocation3] sm:$0xff]
    %v81 = vld [vmem:[#allocation3 + $0x8] sm:$0xff]
    %v82 = vld [vmem:[#allocation3 + $0x10] sm:$0xff]
    %v83 = vld [vmem:[#allocation3 + $0x18] sm:$0xff]
    %v84 = vld [vmem:[#allocation3 + $0x20] sm:$0xff]
    %v85 = vld [vmem:[#allocation3 + $0x28] sm:$0xff]
    %v86 = vld [vmem:[#allocation3 + $0x30] sm:$0xff]
    %v87 = vld [vmem:[#allocation3 + $0x38] sm:$0xff]
    %v88 = vld [vmem:[#allocation3 + $0x40] sm:$0xff]
    %v89 = vld [vmem:[#allocation3 + $0x48] sm:$0xff]
    %v90 = vld [vmem:[#allocation3 + $0x50] sm:$0xff]
    %v91 = vld [vmem:[#allocation3 + $0x58] sm:$0xff]
    %v92 = vld [vmem:[#allocation3 + $0x60] sm:$0xff]
    %v93 = vld [vmem:[#allocation3 + $0x68] sm:$0xff]
    %v94 = vld [vmem:[#allocation3 + $0x70] sm:$0xff]
    %v95 = vld [vmem:[#allocation3 + $0x78] sm:$0xff]
    %v96 = vpack.c.bf16 %v81, %v80
    %v97 = vpack.c.bf16 %v83, %v82
    %v98 = vpack.c.bf16 %v85, %v84
    %v99 = vpack.c.bf16 %v87, %v86
    %v100 = vpack.c.bf16 %v89, %v88
    %v101 = vpack.c.bf16 %v91, %v90
    %v102 = vpack.c.bf16 %v93, %v92
    %v103 = vpack.c.bf16 %v95, %v94
    %v104 = vld [vmem:[#allocation6] sm:$0xf]
    %v105 = vld [vmem:[#allocation6 + $0x4] sm:$0xf]
    %v106 = vld [vmem:[#allocation6 + $0x8] sm:$0xf]
    %v107 = vld [vmem:[#allocation6 + $0xc] sm:$0xf]
    %v108 = vld [vmem:[#allocation6 + $0x10] sm:$0xf]
    %v109 = vld [vmem:[#allocation6 + $0x14] sm:$0xf]
    %v110 = vld [vmem:[#allocation6 + $0x18] sm:$0xf]
    %v111 = vld [vmem:[#allocation6 + $0x1c] sm:$0xf]
    %v112 = vld [vmem:[#allocation6 + $0x20] sm:$0xf]
    %v113 = vld [vmem:[#allocation6 + $0x24] sm:$0xf]
    %v114 = vld [vmem:[#allocation6 + $0x28] sm:$0xf]
    %v115 = vld [vmem:[#allocation6 + $0x2c] sm:$0xf]
    %v116 = vld [vmem:[#allocation6 + $0x30] sm:$0xf]
    %v117 = vld [vmem:[#allocation6 + $0x34] sm:$0xf]
    %v118 = vld [vmem:[#allocation6 + $0x38] sm:$0xf]
    %v119 = vld [vmem:[#allocation6 + $0x3c] sm:$0xf]
    %v136 = vunpack.c.l.b16 %v104
    %v137 = vunpack.c.l.b16 %v105
    %v138 = vunpack.c.l.b16 %v106
    %v139 = vunpack.c.l.b16 %v107
    %v140 = vunpack.c.l.b16 %v108
    %v141 = vunpack.c.l.b16 %v109
    %v142 = vunpack.c.l.b16 %v110
    %v143 = vunpack.c.l.b16 %v111
    %v144 = vunpack.c.l.b16 %v112
    %v145 = vunpack.c.l.b16 %v113
    %v146 = vunpack.c.l.b16 %v114
    %v147 = vunpack.c.l.b16 %v115
    %v148 = vunpack.c.l.b16 %v116
    %v149 = vunpack.c.l.b16 %v117
    %v150 = vunpack.c.l.b16 %v118
    %v151 = vunpack.c.l.b16 %v119
    %v152 = vpack.c.b16 %v137, %v136
    %v153 = vpack.c.b16 %v139, %v138
    %v154 = vpack.c.b16 %v141, %v140
    %v155 = vpack.c.b16 %v143, %v142
    %v156 = vpack.c.b16 %v145, %v144
    %v157 = vpack.c.b16 %v147, %v146
    %v158 = vpack.c.b16 %v149, %v148
    %v159 = vpack.c.b16 %v151, %v150
    %168 = vmatprep.subr.bf16.mxu0 0
    %169 = vmatpush1.bf16.msra.mxu0 %v152
    %170 = vmatprep.subr.bf16.mxu0 0
    %171 = vmatpush1.bf16.msra.mxu0 %v153
    %172 = vmatprep.subr.bf16.mxu0 0
    %173 = vmatpush1.bf16.msra.mxu0 %v154
    %174 = vmatprep.subr.bf16.mxu0 0
    %175 = vmatpush1.bf16.msra.mxu0 %v155
    %176 = vmatprep.subr.bf16.mxu0 0
    %177 = vmatpush1.bf16.msra.mxu0 %v156
    %178 = vmatprep.subr.bf16.mxu0 0
    %179 = vmatpush1.bf16.msra.mxu0 %v157
    %180 = vmatprep.subr.bf16.mxu0 0
    %181 = vmatpush1.bf16.msra.mxu0 %v158
    %182 = vmatprep.subr.bf16.mxu0 0
    %183 = vmatpush1.bf16.msra.mxu0 %v159
    %184 = vmatprep.subr.bf16.mxu0 0
    %185 = vmatpush1.bf16.msra.mxu0 0
    %186 = vmatprep.subr.bf16.mxu0 0
    %187 = vmatpush1.bf16.msra.mxu0 0
    %188 = vmatprep.subr.bf16.mxu0 0
    %189 = vmatpush1.bf16.msra.mxu0 0
    %190 = vmatprep.subr.bf16.mxu0 0
    %191 = vmatpush1.bf16.msra.mxu0 0
    %192 = vmatprep.subr.bf16.mxu0 0
    %193 = vmatpush1.bf16.msra.mxu0 0
    %194 = vmatprep.subr.bf16.mxu0 0
    %195 = vmatpush1.bf16.msra.mxu0 0
    %196 = vmatprep.subr.bf16.mxu0 0
    %197 = vmatpush1.bf16.msra.mxu0 0
    %198 = vmatprep.subr.bf16.mxu0 0
    %199 = vmatpush1.bf16.msra.mxu0 0
    %200 = vmatprep.mubr.bf16.mxu0 0
    %201 = vmatmul.mubr.bf16.gmra.mrb[0].mxu0 %v96
    %v202 = vpop.f32.mrb[0].mxu0
    %v203 = vadd.f32 0.0, %v202
    %v204 = vpop.f32.mrb[0].mxu0
    %v205 = vpop.f32.mrb[0].mxu0
    %v206 = vadd.f32 0.0, %v205
    %v207 = vpop.f32.mrb[0].mxu0
    %208 = vmatprep.mubr.bf16.mxu0 0
    %209 = vmatmul.mubr.bf16.gmra.mrb[0].mxu0 %v97
    %v210 = vpop.f32.mrb[0].mxu0
    %v211 = vadd.f32 0.0, %v210
    %v212 = vpop.f32.mrb[0].mxu0
    %v213 = vpop.f32.mrb[0].mxu0
    %v214 = vadd.f32 0.0, %v213
    %v215 = vpop.f32.mrb[0].mxu0
    %216 = vmatprep.mubr.bf16.mxu0 0
    %217 = vmatmul.mubr.bf16.gmra.mrb[0].mxu0 %v98
    %v218 = vpop.f32.mrb[0].mxu0
    %v219 = vadd.f32 0.0, %v218
    %v220 = vpop.f32.mrb[0].mxu0
    %v221 = vpop.f32.mrb[0].mxu0
    %v222 = vadd.f32 0.0, %v221
    %v223 = vpop.f32.mrb[0].mxu0
    %224 = vmatprep.mubr.bf16.mxu0 0
    %225 = vmatmul.mubr.bf16.gmra.mrb[0].mxu0 %v99
    %v226 = vpop.f32.mrb[0].mxu0
    %v227 = vadd.f32 0.0, %v226
    %v228 = vpop.f32.mrb[0].mxu0
    %v229 = vpop.f32.mrb[0].mxu0
    %v230 = vadd.f32 0.0, %v229
    %v231 = vpop.f32.mrb[0].mxu0
    %232 = vmatprep.mubr.bf16.mxu0 0
    %233 = vmatmul.mubr.bf16.gmra.mrb[0].mxu0 %v100
    %v234 = vpop.f32.mrb[0].mxu0
    %v235 = vadd.f32 0.0, %v234
    %v236 = vpop.f32.mrb[0].mxu0
    %v237 = vpop.f32.mrb[0].mxu0
    %v238 = vadd.f32 0.0, %v237
    %v239 = vpop.f32.mrb[0].mxu0
    %240 = vmatprep.mubr.bf16.mxu0 0
    %241 = vmatmul.mubr.bf16.gmra.mrb[0].mxu0 %v101
    %v242 = vpop.f32.mrb[0].mxu0
    %v243 = vadd.f32 0.0, %v242
    %v244 = vpop.f32.mrb[0].mxu0
    %v245 = vpop.f32.mrb[0].mxu0
    %v246 = vadd.f32 0.0, %v245
    %v247 = vpop.f32.mrb[0].mxu0
    %248 = vmatprep.mubr.bf16.mxu0 0
    %249 = vmatmul.mubr.bf16.gmra.mrb[0].mxu0 %v102
    %v250 = vpop.f32.mrb[0].mxu0
    %v251 = vadd.f32 0.0, %v250
    %v252 = vpop.f32.mrb[0].mxu0
    %v253 = vpop.f32.mrb[0].mxu0
    %v254 = vadd.f32 0.0, %v253
    %v255 = vpop.f32.mrb[0].mxu0
    %256 = vmatprep.mubr.bf16.mxu0 0
    %257 = vmatmul.mubr.bf16.gmra.mrb[0].mxu0 %v103
    %v258 = vpop.f32.mrb[0].mxu0
    %v259 = vadd.f32 0.0, %v258
    %v260 = vpop.f32.mrb[0].mxu0
    %v261 = vpop.f32.mrb[0].mxu0
    %v262 = vadd.f32 0.0, %v261
    %v263 = vpop.f32.mrb[0].mxu0
    %264 = vdwg.mxu0
    %v265 = vadd.f32 %v64, %v203
    %v266 = vadd.f32 %v65, %v206
    %v267 = vadd.f32 %v66, %v211
    %v268 = vadd.f32 %v67, %v214
    %v269 = vadd.f32 %v68, %v219
    %v270 = vadd.f32 %v69, %v222
    %v271 = vadd.f32 %v70, %v227
    %v272 = vadd.f32 %v71, %v230
    %v273 = vadd.f32 %v72, %v235
    %v274 = vadd.f32 %v73, %v238
    %v275 = vadd.f32 %v74, %v243
    %v276 = vadd.f32 %v75, %v246
    %v277 = vadd.f32 %v76, %v251
    %v278 = vadd.f32 %v77, %v254
    %v279 = vadd.f32 %v78, %v259
    %v280 = vadd.f32 %v79, %v262
    %281 = vst [vmem:[#allocation2] sm:$0xff] %v265
    %282 = vst [vmem:[#allocation2 + $0x8] sm:$0xff] %v266
    %283 = vst [vmem:[#allocation2 + $0x10] sm:$0xff] %v267
    %284 = vst [vmem:[#allocation2 + $0x18] sm:$0xff] %v268
    %285 = vst [vmem:[#allocation2 + $0x20] sm:$0xff] %v269
    %286 = vst [vmem:[#allocation2 + $0x28] sm:$0xff] %v270
    %287 = vst [vmem:[#allocation2 + $0x30] sm:$0xff] %v271
    %288 = vst [vmem:[#allocation2 + $0x38] sm:$0xff] %v272
    %289 = vst [vmem:[#allocation2 + $0x40] sm:$0xff] %v273
    %290 = vst [vmem:[#allocation2 + $0x48] sm:$0xff] %v274
    %291 = vst [vmem:[#allocation2 + $0x50] sm:$0xff] %v275
    %292 = vst [vmem:[#allocation2 + $0x58] sm:$0xff] %v276
    %293 = vst [vmem:[#allocation2 + $0x60] sm:$0xff] %v277
    %294 = vst [vmem:[#allocation2 + $0x68] sm:$0xff] %v278
    %295 = vst [vmem:[#allocation2 + $0x70] sm:$0xff] %v279
    %296 = vst [vmem:[#allocation2 + $0x78] sm:$0xff] %v280
    // Predicated region
    $region26: #{tpu_custom_call.1} parent=1 // pred_check
      %p297 = pneg %p44
    $region27: #{tpu_custom_call.1} parent=1 // pred_check_branch
      %299 = sbr.rel (%p297) target = $region29
    $region28: #{tpu_custom_call.1} parent=1 // pred_region
      %v300 = vld [vmem:[#allocation2] sm:$0xff]
      %v301 = vld [vmem:[#allocation2 + $0x8] sm:$0xff]
      %v302 = vld [vmem:[#allocation2 + $0x10] sm:$0xff]
      %v303 = vld [vmem:[#allocation2 + $0x18] sm:$0xff]
      %v304 = vld [vmem:[#allocation2 + $0x20] sm:$0xff]
      %v305 = vld [vmem:[#allocation2 + $0x28] sm:$0xff]
      %v306 = vld [vmem:[#allocation2 + $0x30] sm:$0xff]
      %v307 = vld [vmem:[#allocation2 + $0x38] sm:$0xff]
      %v308 = vld [vmem:[#allocation2 + $0x40] sm:$0xff]
      %v309 = vld [vmem:[#allocation2 + $0x48] sm:$0xff]
      %v310 = vld [vmem:[#allocation2 + $0x50] sm:$0xff]
      %v311 = vld [vmem:[#allocation2 + $0x58] sm:$0xff]
      %v312 = vld [vmem:[#allocation2 + $0x60] sm:$0xff]
      %v313 = vld [vmem:[#allocation2 + $0x68] sm:$0xff]
      %v314 = vld [vmem:[#allocation2 + $0x70] sm:$0xff]
      %v315 = vld [vmem:[#allocation2 + $0x78] sm:$0xff]
      %v316 = vld [vmem:[%s2] sm:$0x1]
      %v318 = vlaneseq
      %v319 = vshrl.u32 %v318, 7
      %v320 = vsub.s32 0, %v319
      %v321 = vrot.slane %v316, %v320
      %v323 = vadd.f32 %v300, %v321
      %v324 = vadd.f32 %v301, %v321
      %v325 = vadd.f32 %v302, %v321
      %v326 = vadd.f32 %v303, %v321
      %v327 = vadd.f32 %v304, %v321
      %v328 = vadd.f32 %v305, %v321
      %v329 = vadd.f32 %v306, %v321
      %v330 = vadd.f32 %v307, %v321
      %v331 = vadd.f32 %v308, %v321
      %v332 = vadd.f32 %v309, %v321
      %v333 = vadd.f32 %v310, %v321
      %v334 = vadd.f32 %v311, %v321
      %v335 = vadd.f32 %v312, %v321
      %v336 = vadd.f32 %v313, %v321
      %v337 = vadd.f32 %v314, %v321
      %v338 = vadd.f32 %v315, %v321
      %v339 = vmax.f32 %v323, 0.0
      %v340 = vmax.f32 %v324, 0.0
      %v341 = vmax.f32 %v325, 0.0
      %v342 = vmax.f32 %v326, 0.0
      %v343 = vmax.f32 %v327, 0.0
      %v344 = vmax.f32 %v328, 0.0
      %v345 = vmax.f32 %v329, 0.0
      %v346 = vmax.f32 %v330, 0.0
      %v347 = vmax.f32 %v331, 0.0
      %v348 = vmax.f32 %v332, 0.0
      %v349 = vmax.f32 %v333, 0.0
      %v350 = vmax.f32 %v334, 0.0
      %v351 = vmax.f32 %v335, 0.0
      %v352 = vmax.f32 %v336, 0.0
      %v353 = vmax.f32 %v337, 0.0
      %v354 = vmax.f32 %v338, 0.0
      %355 = vst [vmem:[#allocation8] sm:$0xff] %v339
      %356 = vst [vmem:[#allocation8 + $0x8] sm:$0xff] %v340
      %357 = vst [vmem:[#allocation8 + $0x10] sm:$0xff] %v341
      %358 = vst [vmem:[#allocation8 + $0x18] sm:$0xff] %v342
      %359 = vst [vmem:[#allocation8 + $0x20] sm:$0xff] %v343
      %360 = vst [vmem:[#allocation8 + $0x28] sm:$0xff] %v344
      %361 = vst [vmem:[#allocation8 + $0x30] sm:$0xff] %v345
      %362 = vst [vmem:[#allocation8 + $0x38] sm:$0xff] %v346
      %363 = vst [vmem:[#allocation8 + $0x40] sm:$0xff] %v347
      %364 = vst [vmem:[#allocation8 + $0x48] sm:$0xff] %v348
      %365 = vst [vmem:[#allocation8 + $0x50] sm:$0xff] %v349
      %366 = vst [vmem:[#allocation8 + $0x58] sm:$0xff] %v350
      %367 = vst [vmem:[#allocation8 + $0x60] sm:$0xff] %v351
      %368 = vst [vmem:[#allocation8 + $0x68] sm:$0xff] %v352
      %369 = vst [vmem:[#allocation8 + $0x70] sm:$0xff] %v353
      %370 = vst [vmem:[#allocation8 + $0x78] sm:$0xff] %v354
    $region29: #{tpu_custom_call.1} parent=1 // pred_fallthru
      _
    // Predicated region
    $region30: #{tpu_custom_call.1} parent=1 // pred_check
      _
    $region31: #{tpu_custom_call.1} parent=1 // pred_check_branch
      %372 = sbr.rel (0) target = $region33
    $region32: #{tpu_custom_call.1} parent=1 // pred_region
      %s374 = ssub.s32 2048, 2048
      %375 = vsyncadd [#allocation5], %s374
      %s376 = sshll.u32 [#allocation8], 4
      %s377 = int_to_ptr.vmem [resolvable:$true] %s376
      %382 = dma.vmem_to_hbm [thread:$0]  %s377, 2048, %s3, [#allocation5], 128, 128, 8
    $region33: #{tpu_custom_call.1} parent=1 // pred_fallthru
      _
    // Predicated region
    $region34: #{tpu_custom_call.1} parent=1 // pred_check
      _
    $region35: #{tpu_custom_call.1} parent=1 // pred_check_branch
      %384 = sbr.rel (0) target = $region37
    $region36: #{tpu_custom_call.1} parent=1 // pred_region
      %385 = dma.done [#allocation5], 2048
    $region37: #{tpu_custom_call.1} parent=1 // pred_fallthru
      _
    %386 = vsyncpa [#allocation4], 1
    %387 = vsyncpa [#allocation7], 1
    %388 = vsyncpa [#allocation5], 1

</llo_original>
